<compile_context>
chip_gen: v7x
topology: tpu7x:2x2x1
jax: 0.10.0
libtpu: 0.0.40
codegen_flags: <defaults>
</compile_context>

<pallas_src>
import functools

import jax
import jax.numpy as jnp
from jax.experimental import pallas as pl
from jax.experimental.pallas import tpu as pltpu


_INV_SQRT2 = 0.7071067811865476


def _round_up(a: int, b: int) -> int:
    return (a + b - 1) // b * b


def _pad2(a, rows: int, cols: int):
    pr = rows - a.shape[0]
    pc = cols - a.shape[1]
    if pr or pc:
        a = jnp.pad(a, ((0, pr), (0, pc)))
    return a


def _mlp_kernel(x_ref, w1_ref, b1_ref, w2_ref, b2_ref, o_ref):
    # x_ref: (tm, Cp) bf16   w1_ref: (Cp, Hp) bf16   b1_ref: (1, Hp) f32
    # w2_ref: (Hp, Op) bf16  b2_ref: (1, Op) f32     o_ref: (tm, Op) f32
    h = jnp.dot(x_ref[...], w1_ref[...], preferred_element_type=jnp.float32)
    h = h + b1_ref[...]
    # Exact GELU (PyTorch nn.GELU default): 0.5 * x * (1 + erf(x / sqrt(2))), in f32.
    h = 0.5 * h * (1.0 + jax.lax.erf(h * jnp.float32(_INV_SQRT2)))
    # Dropout(p=0.0) is identity -> nothing to do.
    h = h.astype(w2_ref.dtype)  # back to bf16 for the second MXU pass
    o = jnp.dot(h, w2_ref[...], preferred_element_type=jnp.float32) + b2_ref[...]
    o_ref[...] = o.astype(o_ref.dtype)


@functools.partial(jax.jit, static_argnames=("tm",))
def mlp_pallas(x, w1, b1, w2, b2, *, tm=256):
    """x: (B, N, C). Weights stored as (in, out) = W.T of PyTorch. Returns (B, N, O)."""
    B, N, C = x.shape
    H = w1.shape[1]
    O = w2.shape[1]
    M = B * N

    # Lane / K padding to 128 for full MXU width and unmasked lane-dense stores.
    Cp = _round_up(C, 128)
    Hp = _round_up(H, 128)
    Op = _round_up(O, 128)

    # Row tile: as big as the problem allows, but keep >= ~4 grid steps for
    # v7x's two TensorCores / pipeline overlap on large M.
    tm_eff = min(tm, _round_up(M, 8))
    if M >= 512:
        tm_eff = min(tm_eff, max(128, _round_up(pl.cdiv(M, 4), 128)))
    tm_eff = max(8, tm_eff)
    Mp = _round_up(M, tm_eff)
    grid = (Mp // tm_eff,)

    # bf16 MXU operands (f32 accumulation inside the kernel); biases stay f32.
    x2 = _pad2(x.reshape(M, C), Mp, Cp).astype(jnp.bfloat16)
    w1p = _pad2(w1, Cp, Hp).astype(jnp.bfloat16)
    w2p = _pad2(w2, Hp, Op).astype(jnp.bfloat16)
    b1p = _pad2(b1.reshape(1, H), 1, Hp).astype(jnp.float32)
    b2p = _pad2(b2.reshape(1, O), 1, Op).astype(jnp.float32)

    # VMEM budget: double-buffered operands + elementwise intermediates,
    # clamped to [32 MiB, 64 MiB] (safe on v5e/v6e/v7x scoped limits).
    operand_bytes = (tm_eff * Cp * 2 + Cp * Hp * 2 + Hp * 4
                     + Hp * Op * 2 + Op * 4 + tm_eff * Op * 4)
    interm_bytes = tm_eff * Hp * 4 + tm_eff * Hp * 2 + tm_eff * Op * 4
    vmem_limit = int(min(64 << 20,
                         max(32 << 20, 2 * operand_bytes + interm_bytes + (4 << 20))))

    out = pl.pallas_call(
        _mlp_kernel,
        out_shape=jax.ShapeDtypeStruct((Mp, Op), jnp.float32),
        grid_spec=pl.GridSpec(
            grid=grid,
            in_specs=[
                pl.BlockSpec((tm_eff, Cp), lambda i: (i, 0)),   # x row tile
                pl.BlockSpec((Cp, Hp), lambda i: (0, 0)),       # W1 (grid-invariant)
                pl.BlockSpec((1, Hp), lambda i: (0, 0)),        # b1
                pl.BlockSpec((Hp, Op), lambda i: (0, 0)),       # W2 (grid-invariant)
                pl.BlockSpec((1, Op), lambda i: (0, 0)),        # b2
            ],
            out_specs=pl.BlockSpec((tm_eff, Op), lambda i: (i, 0)),
        ),
        compiler_params=pltpu.CompilerParams(
            dimension_semantics=("parallel",),
            vmem_limit_bytes=vmem_limit,
        ),
    )(x2, w1p, b1p, w2p, b2p)

    return out[:M, :O].astype(x.dtype).reshape(B, N, O)


def init_mlp_params(key, in_features, hidden_features, out_features):
    """Deterministic synthetic init mimicking nn.Linear (uniform +/- 1/sqrt(fan_in))."""
    k1, k2, k3, k4 = jax.random.split(key, 4)
    lim1 = 1.0 / jnp.sqrt(in_features)
    lim2 = 1.0 / jnp.sqrt(hidden_features)
    # stored as (in, out) = W.T relative to PyTorch's (out, in)
    w1 = jax.random.uniform(k1, (in_features, hidden_features), jnp.float32, -lim1, lim1)
    b1 = jax.random.uniform(k2, (1, hidden_features), jnp.float32, -lim1, lim1)
    w2 = jax.random.uniform(k3, (hidden_features, out_features), jnp.float32, -lim2, lim2)
    b2 = jax.random.uniform(k4, (1, out_features), jnp.float32, -lim2, lim2)
    return w1, b1, w2, b2


if __name__ == "__main__":
    # Small Swin-like token MLP. M = B*N = 200 is deliberately NOT a multiple of
    # the row tile and C/H/O are below 128, so the padding/remainder paths are
    # exercised by the demo.
    B, N, C = 2, 100, 48
    H = 96          # hidden_features (mlp_ratio = 2)
    O = C           # out_features defaults to in_features

    key = jax.random.PRNGKey(0)
    kx, kp = jax.random.split(key)
    x = jax.random.normal(kx, (B, N, C), jnp.float32)
    w1, b1, w2, b2 = init_mlp_params(kp, C, H, O)

    y = mlp_pallas(x, w1, b1, w2, b2, tm=128)
    jax.block_until_ready(y)
    assert y.shape == (B, N, O)

    # Reference 1: same bf16 matmul operands / f32 accumulation as the kernel.
    xb = x.reshape(-1, C).astype(jnp.bfloat16)
    h = jnp.dot(xb, w1.astype(jnp.bfloat16), preferred_element_type=jnp.float32) + b1
    h = 0.5 * h * (1.0 + jax.lax.erf(h * jnp.float32(_INV_SQRT2)))
    y_bf16_ref = (jnp.dot(h.astype(jnp.bfloat16), w2.astype(jnp.bfloat16),
                          preferred_element_type=jnp.float32) + b2).reshape(B, N, O)

    # Reference 2: pure f32 math (matches the PyTorch module's computation).
    hf = x.reshape(-1, C) @ w1 + b1
    hf = 0.5 * hf * (1.0 + jax.lax.erf(hf / jnp.sqrt(2.0)))
    y_f32_ref = (hf @ w2 + b2).reshape(B, N, O)

    assert jnp.allclose(y, y_bf16_ref, atol=5e-3, rtol=5e-3), "mismatch vs bf16-matched reference"
    assert jnp.allclose(y, y_f32_ref, atol=5e-2, rtol=5e-2), "mismatch vs f32 reference"

    print("KERNEL_OK")
</pallas_src>

<mosaic_0001>
module attributes {stable_mosaic.version = 11 : i64} {
  func.func @_mlp_kernel(%arg0: i32, %arg1: memref<128x128xbf16, #tpu.memory_space<vmem>>, %arg2: memref<128x128xbf16, #tpu.memory_space<vmem>>, %arg3: memref<1x128xf32, #tpu.memory_space<vmem>>, %arg4: memref<128x128xbf16, #tpu.memory_space<vmem>>, %arg5: memref<1x128xf32, #tpu.memory_space<vmem>>, %arg6: memref<128x128xf32, #tpu.memory_space<vmem>>) attributes {dimension_semantics = [#tpu.dimension_semantics<parallel>], iteration_bounds = array<i64: 2>, scalar_prefetch = 0 : i64, scratch_operands = 0 : i64, tpu.core_type = #tpu.core_type<tc>, window_params = [{transform_indices = @transform_0, window_bounds = array<i64: 128, 128>}, {pipeline_mode = #tpu.pipeline_mode<synchronous>, transform_indices = @transform_1, window_bounds = array<i64: 128, 128>}, {pipeline_mode = #tpu.pipeline_mode<synchronous>, transform_indices = @transform_2, window_bounds = array<i64: 1, 128>}, {pipeline_mode = #tpu.pipeline_mode<synchronous>, transform_indices = @transform_3, window_bounds = array<i64: 128, 128>}, {pipeline_mode = #tpu.pipeline_mode<synchronous>, transform_indices = @transform_4, window_bounds = array<i64: 1, 128>}, {transform_indices = @transform_5, window_bounds = array<i64: 128, 128>}]} {
    %c0 = arith.constant 0 : index
    %c0_0 = arith.constant 0 : index
    %0 = vector.load %arg1[%c0, %c0_0] : memref<128x128xbf16, #tpu.memory_space<vmem>>, vector<128x128xbf16>
    %c0_1 = arith.constant 0 : index
    %c0_2 = arith.constant 0 : index
    %1 = vector.load %arg2[%c0_1, %c0_2] : memref<128x128xbf16, #tpu.memory_space<vmem>>, vector<128x128xbf16>
    %cst = arith.constant dense<0.000000e+00> : vector<128x128xf32>
    %2 = tpu.matmul %0, %1, %cst {dimension_numbers = #tpu.dot_dimension_numbers<[1], [0], [0], [1], [0, 0, 1, 1], [], []>} : vector<128x128xbf16>, vector<128x128xbf16>, vector<128x128xf32> -> vector<128x128xf32>
    %c0_3 = arith.constant 0 : index
    %c0_4 = arith.constant 0 : index
    %3 = vector.load %arg3[%c0_3, %c0_4] : memref<1x128xf32, #tpu.memory_space<vmem>>, vector<1x128xf32>
    %4 = vector.broadcast %3 : vector<1x128xf32> to vector<128x128xf32>
    %5 = arith.addf %2, %4 : vector<128x128xf32>
    %cst_5 = arith.constant 5.000000e-01 : f32
    %6 = vector.broadcast %cst_5 : f32 to vector<128x128xf32>
    %7 = arith.mulf %6, %5 : vector<128x128xf32>
    %cst_6 = arith.constant 0.707106769 : f32
    %8 = vector.broadcast %cst_6 : f32 to vector<128x128xf32>
    %9 = arith.mulf %5, %8 : vector<128x128xf32>
    %10 = math.erf %9 : vector<128x128xf32>
    %cst_7 = arith.constant 1.000000e+00 : f32
    %11 = vector.broadcast %cst_7 : f32 to vector<128x128xf32>
    %12 = arith.addf %11, %10 : vector<128x128xf32>
    %13 = arith.mulf %7, %12 : vector<128x128xf32>
    %14 = arith.truncf %13 : vector<128x128xf32> to vector<128x128xbf16>
    %c0_8 = arith.constant 0 : index
    %c0_9 = arith.constant 0 : index
    %15 = vector.load %arg4[%c0_8, %c0_9] : memref<128x128xbf16, #tpu.memory_space<vmem>>, vector<128x128xbf16>
    %cst_10 = arith.constant dense<0.000000e+00> : vector<128x128xf32>
    %16 = tpu.matmul %14, %15, %cst_10 {dimension_numbers = #tpu.dot_dimension_numbers<[1], [0], [0], [1], [0, 0, 1, 1], [], []>} : vector<128x128xbf16>, vector<128x128xbf16>, vector<128x128xf32> -> vector<128x128xf32>
    %c0_11 = arith.constant 0 : index
    %c0_12 = arith.constant 0 : index
    %17 = vector.load %arg5[%c0_11, %c0_12] : memref<1x128xf32, #tpu.memory_space<vmem>>, vector<1x128xf32>
    %18 = vector.broadcast %17 : vector<1x128xf32> to vector<128x128xf32>
    %19 = arith.addf %16, %18 : vector<128x128xf32>
    %c0_13 = arith.constant 0 : index
    %c0_14 = arith.constant 0 : index
    %20 = vector.load %arg6[%c0_13, %c0_14] : memref<128x128xf32, #tpu.memory_space<vmem>>, vector<128x128xf32>
    tpu.vector_store %arg6[%c0_13, %c0_14], %19 {strides = array<i32>} : memref<128x128xf32, #tpu.memory_space<vmem>>, vector<128x128xf32>,
    return
  }
  func.func @transform_0(%arg0: i32) -> (i32, i32) {
    %c0_i32 = arith.constant 0 : i32
    %c0_i32_0 = arith.constant 0 : i32
    return %arg0, %c0_i32 : i32, i32
  }
  func.func @transform_1(%arg0: i32) -> (i32, i32) {
    %c0_i32 = arith.constant 0 : i32
    %c0_i32_0 = arith.constant 0 : i32
    %c0_i32_1 = arith.constant 0 : i32
    return %c0_i32, %c0_i32_0 : i32, i32
  }
  func.func @transform_2(%arg0: i32) -> (i32, i32) {
    %c0_i32 = arith.constant 0 : i32
    %c0_i32_0 = arith.constant 0 : i32
    %c0_i32_1 = arith.constant 0 : i32
    return %c0_i32, %c0_i32_0 : i32, i32
  }
  func.func @transform_3(%arg0: i32) -> (i32, i32) {
    %c0_i32 = arith.constant 0 : i32
    %c0_i32_0 = arith.constant 0 : i32
    %c0_i32_1 = arith.constant 0 : i32
    return %c0_i32, %c0_i32_0 : i32, i32
  }
  func.func @transform_4(%arg0: i32) -> (i32, i32) {
    %c0_i32 = arith.constant 0 : i32
    %c0_i32_0 = arith.constant 0 : i32
    %c0_i32_1 = arith.constant 0 : i32
    return %c0_i32, %c0_i32_0 : i32, i32
  }
  func.func @transform_5(%arg0: i32) -> (i32, i32) {
    %c0_i32 = arith.constant 0 : i32
    %c0_i32_0 = arith.constant 0 : i32
    return %arg0, %c0_i32 : i32, i32
  }
}

</mosaic_0001>

<llo_original>
// kernel: mlp_pallas.1
$region0: #{mlp_pallas.1}
  #allocation0 [shape = 'u32[]', space=smem, size = 0x4, offset = 0x4, fixed_abs, tag = 'smem constant byte address 0x4 - core index']
  #allocation1 [shape = 'u32[144,128]{1,0:T(1,128)}', space=vmem, size = 0x12000, scoped, tag = 'internal scratch']
  %s0 = inlined_call_operand.vmem [shape: bf16[256,128], index: 0, kind: input, shape index: {}]
  %s1 = inlined_call_operand.vmem [shape: bf16[128,128], index: 1, kind: input, shape index: {}]
  %s2 = inlined_call_operand.vmem [shape: f32[1,128], index: 2, kind: input, shape index: {}]
  %s3 = inlined_call_operand.vmem [shape: bf16[128,128], index: 3, kind: input, shape index: {}]
  %s4 = inlined_call_operand.vmem [shape: f32[1,128], index: 4, kind: input, shape index: {}]
  %s5 = inlined_call_operand.vmem [shape: f32[256,128], index: 5, kind: output, shape index: {}]
  %s6 = sld [smem:[#allocation0]]
  $region53: #{mlp_pallas.1} parent=0
    _
  %s8 = ssub.s32 1, %s6
  %s9 = scalar_select 0, %s8, %s6
  loop: start=0, step=1, limit=4
  $region2: #{mlp_pallas.1} parent=0 // loop_pre_header
    _
  $region3: #{mlp_pallas.1} parent=0 // loop_header
    %s11 = sphi 0, %s15
    %p12 = scmp.ge.s32.totalorder %s11, 4
    %s21 = sphi 0, %s23
    %s24 = sphi 0, %s21
    %s25 = sphi 0, %s24
    %s41 = sphi 0, %s25
    %s45 = sphi 0, %s45
    %s47 = sphi 0, %s45
    %s48 = sphi 0, %s47
    %s62 = sphi 0, %s48
    %s66 = sphi 0, %s66
    %s68 = sphi 0, %s66
    %s69 = sphi 0, %s68
    %s83 = sphi 0, %s69
    %s87 = sphi 0, %s87
    %s89 = sphi 0, %s87
    %s90 = sphi 0, %s89
    %s104 = sphi 0, %s90
    %s108 = sphi 0, %s108
    %s110 = sphi 0, %s108
    %s111 = sphi 0, %s110
    %s125 = sphi 0, %s111
    %s131 = sphi 0, %s133
    %s134 = sphi 0, %s131
    %s135 = sphi 0, %s134
    %s151 = sphi 0, %s135
  $region4: #{mlp_pallas.1} parent=0 // loop_header_branch
    %14 = sbr.rel (%p12) target = $region8
  $region5: #{mlp_pallas.1} parent=0 // loop_body
    %s16 = ssub.s32 %s11, 1
    %s17 = ssub.s32 %s11, 2
    %s18 = sadd.s32 %s11, 1
    %s19 = ssub.s32 %s11, %s18
    %p20 = scmp.eq.s32.totalorder %s19, 0
    %s22 = sadd.s32 %s21, 1
    %s23 = scalar_select %p20, %s21, %s22
    %p26 = pneg %p20
    %p27 = scmp.eq.s32.totalorder %s11, 1
    %p28 = por %p26, %p27
    %p29 = scmp.ne.s32.totalorder %s21, %s24
    %p30 = scmp.eq.s32.totalorder %s11, 0
    %p31 = por %p29, %p30
    %p32 = scmp.ne.s32.totalorder %s21, %s24
    %p33 = scmp.eq.s32.totalorder %s16, 1
    %p34 = por %p32, %p33
    %p35 = scmp.ne.s32.totalorder %s24, %s25
    %p36 = scmp.eq.s32.totalorder %s16, 0
    %p37 = por %p35, %p36
    %p38 = scmp.ne.s32.totalorder %s24, %s25
    %p39 = scmp.eq.s32.totalorder %s17, 1
    %p40 = por %p38, %p39
    %p42 = scmp.ne.s32.totalorder %s25, %s41
    %p43 = scmp.eq.s32.totalorder %s17, 0
    %p44 = por %p42, %p43
    %s46 = sadd.s32 %s45, 1
    %p49 = scmp.eq.s32.totalorder %s11, 1
    %p50 = scmp.ne.s32.totalorder %s45, %s47
    %p51 = scmp.eq.s32.totalorder %s11, 0
    %p52 = por %p50, %p51
    %p53 = scmp.ne.s32.totalorder %s45, %s47
    %p54 = scmp.eq.s32.totalorder %s16, 1
    %p55 = por %p53, %p54
    %p56 = scmp.ne.s32.totalorder %s47, %s48
    %p57 = scmp.eq.s32.totalorder %s16, 0
    %p58 = por %p56, %p57
    %p59 = scmp.ne.s32.totalorder %s47, %s48
    %p60 = scmp.eq.s32.totalorder %s17, 1
    %p61 = por %p59, %p60
    %p63 = scmp.ne.s32.totalorder %s48, %s62
    %p64 = scmp.eq.s32.totalorder %s17, 0
    %p65 = por %p63, %p64
    %s67 = sadd.s32 %s66, 1
    %p70 = scmp.eq.s32.totalorder %s11, 1
    %p71 = scmp.ne.s32.totalorder %s66, %s68
    %p72 = scmp.eq.s32.totalorder %s11, 0
    %p73 = por %p71, %p72
    %p74 = scmp.ne.s32.totalorder %s66, %s68
    %p75 = scmp.eq.s32.totalorder %s16, 1
    %p76 = por %p74, %p75
    %p77 = scmp.ne.s32.totalorder %s68, %s69
    %p78 = scmp.eq.s32.totalorder %s16, 0
    %p79 = por %p77, %p78
    %p80 = scmp.ne.s32.totalorder %s68, %s69
    %p81 = scmp.eq.s32.totalorder %s17, 1
    %p82 = por %p80, %p81
    %p84 = scmp.ne.s32.totalorder %s69, %s83
    %p85 = scmp.eq.s32.totalorder %s17, 0
    %p86 = por %p84, %p85
    %s88 = sadd.s32 %s87, 1
    %p91 = scmp.eq.s32.totalorder %s11, 1
    %p92 = scmp.ne.s32.totalorder %s87, %s89
    %p93 = scmp.eq.s32.totalorder %s11, 0
    %p94 = por %p92, %p93
    %p95 = scmp.ne.s32.totalorder %s87, %s89
    %p96 = scmp.eq.s32.totalorder %s16, 1
    %p97 = por %p95, %p96
    %p98 = scmp.ne.s32.totalorder %s89, %s90
    %p99 = scmp.eq.s32.totalorder %s16, 0
    %p100 = por %p98, %p99
    %p101 = scmp.ne.s32.totalorder %s89, %s90
    %p102 = scmp.eq.s32.totalorder %s17, 1
    %p103 = por %p101, %p102
    %p105 = scmp.ne.s32.totalorder %s90, %s104
    %p106 = scmp.eq.s32.totalorder %s17, 0
    %p107 = por %p105, %p106
    %s109 = sadd.s32 %s108, 1
    %p112 = scmp.eq.s32.totalorder %s11, 1
    %p113 = scmp.ne.s32.totalorder %s108, %s110
    %p114 = scmp.eq.s32.totalorder %s11, 0
    %p115 = por %p113, %p114
    %p116 = scmp.ne.s32.totalorder %s108, %s110
    %p117 = scmp.eq.s32.totalorder %s16, 1
    %p118 = por %p116, %p117
    %p119 = scmp.ne.s32.totalorder %s110, %s111
    %p120 = scmp.eq.s32.totalorder %s16, 0
    %p121 = por %p119, %p120
    %p122 = scmp.ne.s32.totalorder %s110, %s111
    %p123 = scmp.eq.s32.totalorder %s17, 1
    %p124 = por %p122, %p123
    %p126 = scmp.ne.s32.totalorder %s111, %s125
    %p127 = scmp.eq.s32.totalorder %s17, 0
    %p128 = por %p126, %p127
    %s129 = ssub.s32 %s11, %s18
    %p130 = scmp.eq.s32.totalorder %s129, 0
    %s132 = sadd.s32 %s131, 1
    %s133 = scalar_select %p130, %s131, %s132
    %p136 = pneg %p130
    %p137 = scmp.eq.s32.totalorder %s11, 1
    %p138 = por %p136, %p137
    %p139 = scmp.ne.s32.totalorder %s131, %s134
    %p140 = scmp.eq.s32.totalorder %s11, 0
    %p141 = por %p139, %p140
    %p142 = scmp.ne.s32.totalorder %s131, %s134
    %p143 = scmp.eq.s32.totalorder %s16, 1
    %p144 = por %p142, %p143
    %p145 = scmp.ne.s32.totalorder %s134, %s135
    %p146 = scmp.eq.s32.totalorder %s16, 0
    %p147 = por %p145, %p146
    %p148 = scmp.ne.s32.totalorder %s134, %s135
    %p149 = scmp.eq.s32.totalorder %s17, 1
    %p150 = por %p148, %p149
    %p152 = scmp.ne.s32.totalorder %s135, %s151
    %p153 = scmp.eq.s32.totalorder %s17, 0
    %p154 = por %p152, %p153
    %p155 = scmp.le.s32.totalorder 1, %s11
    %p156 = scmp.lt.s32.totalorder %s11, 3
    %p157 = pnand %p155, %p156
    %p158 = pneg %p157
    // Predicated region
    $region9: #{mlp_pallas.1} parent=5 // pred_check
      _
    $region10: #{mlp_pallas.1} parent=5 // pred_check_branch
      %160 = sbr.rel (%p157) target = $region12
    $region11: #{mlp_pallas.1} parent=5 // pred_region
      %s161 = ssub.s32 %s11, 1
      // Predicated region
      $region13: #{mlp_pallas.1} parent=11 // pred_check
        %p162 = pneg %p58
      $region14: #{mlp_pallas.1} parent=11 // pred_check_branch
        %164 = sbr.rel (%p162) target = $region16
      $region15: #{mlp_pallas.1} parent=11 // pred_region
        _
      $region16: #{mlp_pallas.1} parent=11 // pred_fallthru
        _
      // Predicated region
      $region17: #{mlp_pallas.1} parent=11 // pred_check
        %p165 = pneg %p79
      $region18: #{mlp_pallas.1} parent=11 // pred_check_branch
        %167 = sbr.rel (%p165) target = $region20
      $region19: #{mlp_pallas.1} parent=11 // pred_region
        _
      $region20: #{mlp_pallas.1} parent=11 // pred_fallthru
        _
      // Predicated region
      $region21: #{mlp_pallas.1} parent=11 // pred_check
        %p168 = pneg %p100
      $region22: #{mlp_pallas.1} parent=11 // pred_check_branch
        %170 = sbr.rel (%p168) target = $region24
      $region23: #{mlp_pallas.1} parent=11 // pred_region
        _
      $region24: #{mlp_pallas.1} parent=11 // pred_fallthru
        _
      // Predicated region
      $region25: #{mlp_pallas.1} parent=11 // pred_check
        %p171 = pneg %p121
      $region26: #{mlp_pallas.1} parent=11 // pred_check_branch
        %173 = sbr.rel (%p171) target = $region28
      $region27: #{mlp_pallas.1} parent=11 // pred_region
        _
      $region28: #{mlp_pallas.1} parent=11 // pred_fallthru
        _
    $region12: #{mlp_pallas.1} parent=5 // pred_fallthru
      _
    %p174 = scmp.lt.s32.totalorder %s11, 2
    // Predicated region
    $region29: #{mlp_pallas.1} parent=5 // pred_check
      %p175 = pneg %p174
    $region30: #{mlp_pallas.1} parent=5 // pred_check_branch
      %177 = sbr.rel (%p175) target = $region32
    $region31: #{mlp_pallas.1} parent=5 // pred_region
      // Predicated region
      $region33: #{mlp_pallas.1} parent=31 // pred_check
        %p178 = pneg %p31
      $region34: #{mlp_pallas.1} parent=31 // pred_check_branch
        %180 = sbr.rel (%p178) target = $region36
      $region35: #{mlp_pallas.1} parent=31 // pred_region
        %s181 = smul.u32 16, %s11
        %p182 = scmp.lt.s32.totalorder %s181, 31
        %s183 = scalar_select %p182, %s181, 31
        %s184 = smul.addr %s183, 4
        %s185 = scalar_lea.vmem %s0, %s184
        %s186 = smul.u32 16, %s11
      $region36: #{mlp_pallas.1} parent=31 // pred_fallthru
        _
    $region32: #{mlp_pallas.1} parent=5 // pred_fallthru
      _
    %p187 = scmp.le.s32.totalorder 1, %s11
    %p188 = scmp.lt.s32.totalorder %s11, 3
    %p189 = pnand %p187, %p188
    %p190 = pneg %p189
    // Predicated region
    $region37: #{mlp_pallas.1} parent=5 // pred_check
      _
    $region38: #{mlp_pallas.1} parent=5 // pred_check_branch
      %192 = sbr.rel (%p189) target = $region40
    $region39: #{mlp_pallas.1} parent=5 // pred_region
      %s193 = ssub.s32 %s11, 1
      %s194 = smul.u32 16, %s16
      %p195 = scmp.lt.s32.totalorder %s194, 31
      %s196 = scalar_select %p195, %s194, 31
      %s197 = smul.addr %s196, 4
      %s198 = scalar_lea.vmem %s0, %s197
      %p199 = pneg %p37
      %p200 = pneg %p34
      %p201 = pneg %p58
      %p202 = pneg %p55
      %p203 = pneg %p79
      %p204 = pneg %p76
      %p205 = pneg %p100
      %p206 = pneg %p97
      %p207 = pneg %p121
      %p208 = pneg %p118
      %p209 = pneg %p147
      %p210 = pneg %p144
      %s211 = smul.u32 16, %s16
      %p212 = scmp.lt.s32.totalorder %s211, 31
      %s213 = scalar_select %p212, %s211, 31
      %s214 = smul.addr %s213, 8
      %s215 = scalar_lea.vmem %s5, %s214
      %s216 = smul.u32 16, %s16
      %p217 = scmp.lt.s32.totalorder %s216, 31
      %s218 = scalar_select %p217, %s216, 31
      %s219 = smul.addr %s218, 4
      %s220 = scalar_lea.vmem %s0, %s219
      %s221 = smul.u32 16, %s16
      %s222 = smul.u32 16, %s16
      %p223 = scmp.lt.s32.totalorder %s222, 31
      %s224 = scalar_select %p223, %s222, 31
      %s225 = smul.addr %s224, 8
      %s226 = scalar_lea.vmem %s5, %s225
      %s227 = smul.u32 16, %s16
      %v229 = vld [vmem:[%s220] sm:$0xf]
      %v230 = vld [vmem:[%s220 + $0x4] sm:$0xf]
      %v231 = vld [vmem:[%s220 + $0x8] sm:$0xf]
      %v232 = vld [vmem:[%s220 + $0xc] sm:$0xf]
      %v233 = vld [vmem:[%s220 + $0x10] sm:$0xf]
      %v234 = vld [vmem:[%s220 + $0x14] sm:$0xf]
      %v235 = vld [vmem:[%s220 + $0x18] sm:$0xf]
      %v236 = vld [vmem:[%s220 + $0x1c] sm:$0xf]
      %v237 = vld [vmem:[%s220 + $0x20] sm:$0xf]
      %v238 = vld [vmem:[%s220 + $0x24] sm:$0xf]
      %v239 = vld [vmem:[%s220 + $0x28] sm:$0xf]
      %v240 = vld [vmem:[%s220 + $0x2c] sm:$0xf]
      %v241 = vld [vmem:[%s220 + $0x30] sm:$0xf]
      %v242 = vld [vmem:[%s220 + $0x34] sm:$0xf]
      %v243 = vld [vmem:[%s220 + $0x38] sm:$0xf]
      %v244 = vld [vmem:[%s220 + $0x3c] sm:$0xf]
      %v245 = vld [vmem:[%s1] sm:$0xf]
      %v246 = vld [vmem:[%s1 + $0x4] sm:$0xf]
      %v247 = vld [vmem:[%s1 + $0x8] sm:$0xf]
      %v248 = vld [vmem:[%s1 + $0xc] sm:$0xf]
      %v249 = vld [vmem:[%s1 + $0x10] sm:$0xf]
      %v250 = vld [vmem:[%s1 + $0x14] sm:$0xf]
      %v251 = vld [vmem:[%s1 + $0x18] sm:$0xf]
      %v252 = vld [vmem:[%s1 + $0x1c] sm:$0xf]
      %v253 = vld [vmem:[%s1 + $0x20] sm:$0xf]
      %v254 = vld [vmem:[%s1 + $0x24] sm:$0xf]
      %v255 = vld [vmem:[%s1 + $0x28] sm:$0xf]
      %v256 = vld [vmem:[%s1 + $0x2c] sm:$0xf]
      %v257 = vld [vmem:[%s1 + $0x30] sm:$0xf]
      %v258 = vld [vmem:[%s1 + $0x34] sm:$0xf]
      %v259 = vld [vmem:[%s1 + $0x38] sm:$0xf]
      %v260 = vld [vmem:[%s1 + $0x3c] sm:$0xf]
      %v261 = vld [vmem:[%s2] sm:$0x1]
      %v263 = vlaneseq
      %v264 = vshrl.u32 %v263, 7
      %v265 = vsub.s32 0, %v264
      %v266 = vrot.slane %v261, %v265
      %v284 = vunpack.c.l.b16 %v229
      %v285 = vunpack.c.l.b16 %v230
      %v286 = vunpack.c.l.b16 %v231
      %v287 = vunpack.c.l.b16 %v232
      %v288 = vunpack.c.l.b16 %v233
      %v289 = vunpack.c.l.b16 %v234
      %v290 = vunpack.c.l.b16 %v235
      %v291 = vunpack.c.l.b16 %v236
      %v292 = vunpack.c.l.b16 %v237
      %v293 = vunpack.c.l.b16 %v238
      %v294 = vunpack.c.l.b16 %v239
      %v295 = vunpack.c.l.b16 %v240
      %v296 = vunpack.c.l.b16 %v241
      %v297 = vunpack.c.l.b16 %v242
      %v298 = vunpack.c.l.b16 %v243
      %v299 = vunpack.c.l.b16 %v244
      %v300 = vpack.c.b16 %v285, %v284
      %v301 = vpack.c.b16 %v287, %v286
      %v302 = vpack.c.b16 %v289, %v288
      %v303 = vpack.c.b16 %v291, %v290
      %v304 = vpack.c.b16 %v293, %v292
      %v305 = vpack.c.b16 %v295, %v294
      %v306 = vpack.c.b16 %v297, %v296
      %v307 = vpack.c.b16 %v299, %v298
      %v332 = vunpack.c.l.b16 %v245
      %v333 = vunpack.c.l.b16 %v246
      %v334 = vunpack.c.l.b16 %v247
      %v335 = vunpack.c.l.b16 %v248
      %v336 = vunpack.c.l.b16 %v249
      %v337 = vunpack.c.l.b16 %v250
      %v338 = vunpack.c.l.b16 %v251
      %v339 = vunpack.c.l.b16 %v252
      %v340 = vunpack.c.l.b16 %v253
      %v341 = vunpack.c.l.b16 %v254
      %v342 = vunpack.c.l.b16 %v255
      %v343 = vunpack.c.l.b16 %v256
      %v344 = vunpack.c.l.b16 %v257
      %v345 = vunpack.c.l.b16 %v258
      %v346 = vunpack.c.l.b16 %v259
      %v347 = vunpack.c.l.b16 %v260
      %v348 = vpack.c.b16 %v333, %v332
      %v349 = vpack.c.b16 %v335, %v334
      %v350 = vpack.c.b16 %v337, %v336
      %v351 = vpack.c.b16 %v339, %v338
      %v352 = vpack.c.b16 %v341, %v340
      %v353 = vpack.c.b16 %v343, %v342
      %v354 = vpack.c.b16 %v345, %v344
      %v355 = vpack.c.b16 %v347, %v346
      %364 = vmatprep.subr.bf16.mxu0 0
      %365 = vmatpush1.bf16.msra.mxu0 %v348
      %366 = vmatprep.subr.bf16.mxu0 0
      %367 = vmatpush1.bf16.msra.mxu0 %v349
      %368 = vmatprep.subr.bf16.mxu0 0
      %369 = vmatpush1.bf16.msra.mxu0 %v350
      %370 = vmatprep.subr.bf16.mxu0 0
      %371 = vmatpush1.bf16.msra.mxu0 %v351
      %372 = vmatprep.subr.bf16.mxu0 0
      %373 = vmatpush1.bf16.msra.mxu0 %v352
      %374 = vmatprep.subr.bf16.mxu0 0
      %375 = vmatpush1.bf16.msra.mxu0 %v353
      %376 = vmatprep.subr.bf16.mxu0 0
      %377 = vmatpush1.bf16.msra.mxu0 %v354
      %378 = vmatprep.subr.bf16.mxu0 0
      %379 = vmatpush1.bf16.msra.mxu0 %v355
      %380 = vmatprep.subr.bf16.mxu0 0
      %381 = vmatpush1.bf16.msra.mxu0 0
      %382 = vmatprep.subr.bf16.mxu0 0
      %383 = vmatpush1.bf16.msra.mxu0 0
      %384 = vmatprep.subr.bf16.mxu0 0
      %385 = vmatpush1.bf16.msra.mxu0 0
      %386 = vmatprep.subr.bf16.mxu0 0
      %387 = vmatpush1.bf16.msra.mxu0 0
      %388 = vmatprep.subr.bf16.mxu0 0
      %389 = vmatpush1.bf16.msra.mxu0 0
      %390 = vmatprep.subr.bf16.mxu0 0
      %391 = vmatpush1.bf16.msra.mxu0 0
      %392 = vmatprep.subr.bf16.mxu0 0
      %393 = vmatpush1.bf16.msra.mxu0 0
      %394 = vmatprep.subr.bf16.mxu0 0
      %395 = vmatpush1.bf16.msra.mxu0 0
      %396 = vmatprep.mubr.bf16.mxu0 0
      %397 = vmatmul.mubr.bf16.gmra.mrb[0].mxu0 %v300
      %v398 = vpop.f32.mrb[0].mxu0
      %v399 = vadd.f32 %v266, %v398
      %v400 = vpop.f32.mrb[0].mxu0
      %v401 = vpop.f32.mrb[0].mxu0
      %v402 = vadd.f32 %v266, %v401
      %v403 = vpop.f32.mrb[0].mxu0
      %404 = vmatprep.mubr.bf16.mxu0 0
      %405 = vmatmul.mubr.bf16.gmra.mrb[0].mxu0 %v301
      %v406 = vpop.f32.mrb[0].mxu0
      %v407 = vadd.f32 %v266, %v406
      %v408 = vpop.f32.mrb[0].mxu0
      %v409 = vpop.f32.mrb[0].mxu0
      %v410 = vadd.f32 %v266, %v409
      %v411 = vpop.f32.mrb[0].mxu0
      %412 = vmatprep.mubr.bf16.mxu0 0
      %413 = vmatmul.mubr.bf16.gmra.mrb[0].mxu0 %v302
      %v414 = vpop.f32.mrb[0].mxu0
      %v415 = vadd.f32 %v266, %v414
      %v416 = vpop.f32.mrb[0].mxu0
      %v417 = vpop.f32.mrb[0].mxu0
      %v418 = vadd.f32 %v266, %v417
      %v419 = vpop.f32.mrb[0].mxu0
      %420 = vmatprep.mubr.bf16.mxu0 0
      %421 = vmatmul.mubr.bf16.gmra.mrb[0].mxu0 %v303
      %v422 = vpop.f32.mrb[0].mxu0
      %v423 = vadd.f32 %v266, %v422
      %v424 = vpop.f32.mrb[0].mxu0
      %v425 = vpop.f32.mrb[0].mxu0
      %v426 = vadd.f32 %v266, %v425
      %v427 = vpop.f32.mrb[0].mxu0
      %428 = vmatprep.mubr.bf16.mxu0 0
      %429 = vmatmul.mubr.bf16.gmra.mrb[0].mxu0 %v304
      %v430 = vpop.f32.mrb[0].mxu0
      %v431 = vadd.f32 %v266, %v430
      %v432 = vpop.f32.mrb[0].mxu0
      %v433 = vpop.f32.mrb[0].mxu0
      %v434 = vadd.f32 %v266, %v433
      %v435 = vpop.f32.mrb[0].mxu0
      %436 = vmatprep.mubr.bf16.mxu0 0
      %437 = vmatmul.mubr.bf16.gmra.mrb[0].mxu0 %v305
      %v438 = vpop.f32.mrb[0].mxu0
      %v439 = vadd.f32 %v266, %v438
      %v440 = vpop.f32.mrb[0].mxu0
      %v441 = vpop.f32.mrb[0].mxu0
      %v442 = vadd.f32 %v266, %v441
      %v443 = vpop.f32.mrb[0].mxu0
      %444 = vmatprep.mubr.bf16.mxu0 0
      %445 = vmatmul.mubr.bf16.gmra.mrb[0].mxu0 %v306
      %v446 = vpop.f32.mrb[0].mxu0
      %v447 = vadd.f32 %v266, %v446
      %v448 = vpop.f32.mrb[0].mxu0
      %v449 = vpop.f32.mrb[0].mxu0
      %v450 = vadd.f32 %v266, %v449
      %v451 = vpop.f32.mrb[0].mxu0
      %452 = vmatprep.mubr.bf16.mxu0 0
      %453 = vmatmul.mubr.bf16.gmra.mrb[0].mxu0 %v307
      %v454 = vpop.f32.mrb[0].mxu0
      %v455 = vadd.f32 %v266, %v454
      %v456 = vpop.f32.mrb[0].mxu0
      %v457 = vpop.f32.mrb[0].mxu0
      %v458 = vadd.f32 %v266, %v457
      %v459 = vpop.f32.mrb[0].mxu0
      %460 = vdwg.mxu0
      %v461 = vmul.f32 %v399, 0.5
      %v462 = vmul.f32 %v402, 0.5
      %v463 = vmul.f32 %v407, 0.5
      %v464 = vmul.f32 %v410, 0.5
      %v465 = vmul.f32 %v415, 0.5
      %v466 = vmul.f32 %v418, 0.5
      %v467 = vmul.f32 %v423, 0.5
      %v468 = vmul.f32 %v426, 0.5
      %v469 = vmul.f32 %v431, 0.5
      %v470 = vmul.f32 %v434, 0.5
      %v471 = vmul.f32 %v439, 0.5
      %v472 = vmul.f32 %v442, 0.5
      %v473 = vmul.f32 %v447, 0.5
      %v474 = vmul.f32 %v450, 0.5
      %v475 = vmul.f32 %v455, 0.5
      %v476 = vmul.f32 %v458, 0.5
      %v477 = vmul.f32 %v399, 0.70710677
      %v478 = vmul.f32 %v402, 0.70710677
      %v479 = vmul.f32 %v407, 0.70710677
      %v480 = vmul.f32 %v410, 0.70710677
      %v481 = vmul.f32 %v415, 0.70710677
      %v482 = vmul.f32 %v418, 0.70710677
      %v483 = vmul.f32 %v423, 0.70710677
      %v484 = vmul.f32 %v426, 0.70710677
      %v485 = vmul.f32 %v431, 0.70710677
      %v486 = vmul.f32 %v434, 0.70710677
      %v487 = vmul.f32 %v439, 0.70710677
      %v488 = vmul.f32 %v442, 0.70710677
      %v489 = vmul.f32 %v447, 0.70710677
      %v490 = vmul.f32 %v450, 0.70710677
      %v491 = vmul.f32 %v455, 0.70710677
      %v492 = vmul.f32 %v458, 0.70710677
      %v493 = verf.f32.pop %v477
      %v494 = verf.f32.pop %v478
      %v495 = verf.f32.pop %v479
      %v496 = verf.f32.pop %v480
      %v497 = verf.f32.pop %v481
      %v498 = verf.f32.pop %v482
      %v499 = verf.f32.pop %v483
      %v500 = verf.f32.pop %v484
      %v501 = verf.f32.pop %v485
      %v502 = verf.f32.pop %v486
      %v503 = verf.f32.pop %v487
      %v504 = verf.f32.pop %v488
      %v505 = verf.f32.pop %v489
      %v506 = verf.f32.pop %v490
      %v507 = verf.f32.pop %v491
      %v508 = verf.f32.pop %v492
      %v509 = vadd.f32 %v493, 1.0
      %v510 = vadd.f32 %v494, 1.0
      %v511 = vadd.f32 %v495, 1.0
      %v512 = vadd.f32 %v496, 1.0
      %v513 = vadd.f32 %v497, 1.0
      %v514 = vadd.f32 %v498, 1.0
      %v515 = vadd.f32 %v499, 1.0
      %v516 = vadd.f32 %v500, 1.0
      %v517 = vadd.f32 %v501, 1.0
      %v518 = vadd.f32 %v502, 1.0
      %v519 = vadd.f32 %v503, 1.0
      %v520 = vadd.f32 %v504, 1.0
      %v521 = vadd.f32 %v505, 1.0
      %v522 = vadd.f32 %v506, 1.0
      %v523 = vadd.f32 %v507, 1.0
      %v524 = vadd.f32 %v508, 1.0
      %v525 = vmul.f32 %v461, %v509
      %v526 = vmul.f32 %v462, %v510
      %v527 = vmul.f32 %v463, %v511
      %v528 = vmul.f32 %v464, %v512
      %v529 = vmul.f32 %v465, %v513
      %v530 = vmul.f32 %v466, %v514
      %v531 = vmul.f32 %v467, %v515
      %v532 = vmul.f32 %v468, %v516
      %v533 = vmul.f32 %v469, %v517
      %v534 = vmul.f32 %v470, %v518
      %v535 = vmul.f32 %v471, %v519
      %v536 = vmul.f32 %v472, %v520
      %v537 = vmul.f32 %v473, %v521
      %v538 = vmul.f32 %v474, %v522
      %v539 = vmul.f32 %v475, %v523
      %v540 = vmul.f32 %v476, %v524
      %v541 = vpack.c.bf16 %v526, %v525
      %v542 = vpack.c.bf16 %v528, %v527
      %v543 = vpack.c.bf16 %v530, %v529
      %v544 = vpack.c.bf16 %v532, %v531
      %v545 = vpack.c.bf16 %v534, %v533
      %v546 = vpack.c.bf16 %v536, %v535
      %v547 = vpack.c.bf16 %v538, %v537
      %v548 = vpack.c.bf16 %v540, %v539
      %v549 = vld [vmem:[%s3] sm:$0xf]
      %v550 = vld [vmem:[%s3 + $0x4] sm:$0xf]
      %v551 = vld [vmem:[%s3 + $0x8] sm:$0xf]
      %v552 = vld [vmem:[%s3 + $0xc] sm:$0xf]
      %v553 = vld [vmem:[%s3 + $0x10] sm:$0xf]
      %v554 = vld [vmem:[%s3 + $0x14] sm:$0xf]
      %v555 = vld [vmem:[%s3 + $0x18] sm:$0xf]
      %v556 = vld [vmem:[%s3 + $0x1c] sm:$0xf]
      %v557 = vld [vmem:[%s3 + $0x20] sm:$0xf]
      %v558 = vld [vmem:[%s3 + $0x24] sm:$0xf]
      %v559 = vld [vmem:[%s3 + $0x28] sm:$0xf]
      %v560 = vld [vmem:[%s3 + $0x2c] sm:$0xf]
      %v561 = vld [vmem:[%s3 + $0x30] sm:$0xf]
      %v562 = vld [vmem:[%s3 + $0x34] sm:$0xf]
      %v563 = vld [vmem:[%s3 + $0x38] sm:$0xf]
      %v564 = vld [vmem:[%s3 + $0x3c] sm:$0xf]
      %v565 = vld [vmem:[%s4] sm:$0x1]
      %v567 = vlaneseq
      %v568 = vshrl.u32 %v567, 7
      %v569 = vsub.s32 0, %v568
      %v570 = vrot.slane %v565, %v569
      %v588 = vunpack.c.l.b16 %v549
      %v589 = vunpack.c.l.b16 %v550
      %v590 = vunpack.c.l.b16 %v551
      %v591 = vunpack.c.l.b16 %v552
      %v592 = vunpack.c.l.b16 %v553
      %v593 = vunpack.c.l.b16 %v554
      %v594 = vunpack.c.l.b16 %v555
      %v595 = vunpack.c.l.b16 %v556
      %v596 = vunpack.c.l.b16 %v557
      %v597 = vunpack.c.l.b16 %v558
      %v598 = vunpack.c.l.b16 %v559
      %v599 = vunpack.c.l.b16 %v560
      %v600 = vunpack.c.l.b16 %v561
      %v601 = vunpack.c.l.b16 %v562
      %v602 = vunpack.c.l.b16 %v563
      %v603 = vunpack.c.l.b16 %v564
      %v604 = vpack.c.b16 %v589, %v588
      %v605 = vpack.c.b16 %v591, %v590
      %v606 = vpack.c.b16 %v593, %v592
      %v607 = vpack.c.b16 %v595, %v594
      %v608 = vpack.c.b16 %v597, %v596
      %v609 = vpack.c.b16 %v599, %v598
      %v610 = vpack.c.b16 %v601, %v600
      %v611 = vpack.c.b16 %v603, %v602
      %620 = vmatprep.subr.bf16.mxu0 0
      %621 = vmatpush1.bf16.msra.mxu0 %v604
      %622 = vmatprep.subr.bf16.mxu0 0
      %623 = vmatpush1.bf16.msra.mxu0 %v605
      %624 = vmatprep.subr.bf16.mxu0 0
      %625 = vmatpush1.bf16.msra.mxu0 %v606
      %626 = vmatprep.subr.bf16.mxu0 0
      %627 = vmatpush1.bf16.msra.mxu0 %v607
      %628 = vmatprep.subr.bf16.mxu0 0
      %629 = vmatpush1.bf16.msra.mxu0 %v608
      %630 = vmatprep.subr.bf16.mxu0 0
      %631 = vmatpush1.bf16.msra.mxu0 %v609
      %632 = vmatprep.subr.bf16.mxu0 0
      %633 = vmatpush1.bf16.msra.mxu0 %v610
      %634 = vmatprep.subr.bf16.mxu0 0
      %635 = vmatpush1.bf16.msra.mxu0 %v611
      %636 = vmatprep.subr.bf16.mxu0 0
      %637 = vmatpush1.bf16.msra.mxu0 0
      %638 = vmatprep.subr.bf16.mxu0 0
      %639 = vmatpush1.bf16.msra.mxu0 0
      %640 = vmatprep.subr.bf16.mxu0 0
      %641 = vmatpush1.bf16.msra.mxu0 0
      %642 = vmatprep.subr.bf16.mxu0 0
      %643 = vmatpush1.bf16.msra.mxu0 0
      %644 = vmatprep.subr.bf16.mxu0 0
      %645 = vmatpush1.bf16.msra.mxu0 0
      %646 = vmatprep.subr.bf16.mxu0 0
      %647 = vmatpush1.bf16.msra.mxu0 0
      %648 = vmatprep.subr.bf16.mxu0 0
      %649 = vmatpush1.bf16.msra.mxu0 0
      %650 = vmatprep.subr.bf16.mxu0 0
      %651 = vmatpush1.bf16.msra.mxu0 0
      %652 = vmatprep.mubr.bf16.mxu0 0
      %653 = vmatmul.mubr.bf16.gmra.mrb[0].mxu0 %v541
      %v654 = vpop.f32.mrb[0].mxu0
      %v655 = vadd.f32 %v570, %v654
      %v656 = vpop.f32.mrb[0].mxu0
      %v657 = vpop.f32.mrb[0].mxu0
      %v658 = vadd.f32 %v570, %v657
      %v659 = vpop.f32.mrb[0].mxu0
      %660 = vmatprep.mubr.bf16.mxu0 0
      %661 = vmatmul.mubr.bf16.gmra.mrb[0].mxu0 %v542
      %v662 = vpop.f32.mrb[0].mxu0
      %v663 = vadd.f32 %v570, %v662
      %v664 = vpop.f32.mrb[0].mxu0
      %v665 = vpop.f32.mrb[0].mxu0
      %v666 = vadd.f32 %v570, %v665
      %v667 = vpop.f32.mrb[0].mxu0
      %668 = vmatprep.mubr.bf16.mxu0 0
      %669 = vmatmul.mubr.bf16.gmra.mrb[0].mxu0 %v543
      %v670 = vpop.f32.mrb[0].mxu0
      %v671 = vadd.f32 %v570, %v670
      %v672 = vpop.f32.mrb[0].mxu0
      %v673 = vpop.f32.mrb[0].mxu0
      %v674 = vadd.f32 %v570, %v673
      %v675 = vpop.f32.mrb[0].mxu0
      %676 = vmatprep.mubr.bf16.mxu0 0
      %677 = vmatmul.mubr.bf16.gmra.mrb[0].mxu0 %v544
      %v678 = vpop.f32.mrb[0].mxu0
      %v679 = vadd.f32 %v570, %v678
      %v680 = vpop.f32.mrb[0].mxu0
      %v681 = vpop.f32.mrb[0].mxu0
      %v682 = vadd.f32 %v570, %v681
      %v683 = vpop.f32.mrb[0].mxu0
      %684 = vmatprep.mubr.bf16.mxu0 0
      %685 = vmatmul.mubr.bf16.gmra.mrb[0].mxu0 %v545
      %v686 = vpop.f32.mrb[0].mxu0
      %v687 = vadd.f32 %v570, %v686
      %v688 = vpop.f32.mrb[0].mxu0
      %v689 = vpop.f32.mrb[0].mxu0
      %v690 = vadd.f32 %v570, %v689
      %v691 = vpop.f32.mrb[0].mxu0
      %692 = vmatprep.mubr.bf16.mxu0 0
      %693 = vmatmul.mubr.bf16.gmra.mrb[0].mxu0 %v546
      %v694 = vpop.f32.mrb[0].mxu0
      %v695 = vadd.f32 %v570, %v694
      %v696 = vpop.f32.mrb[0].mxu0
      %v697 = vpop.f32.mrb[0].mxu0
      %v698 = vadd.f32 %v570, %v697
      %v699 = vpop.f32.mrb[0].mxu0
      %700 = vmatprep.mubr.bf16.mxu0 0
      %701 = vmatmul.mubr.bf16.gmra.mrb[0].mxu0 %v547
      %v702 = vpop.f32.mrb[0].mxu0
      %v703 = vadd.f32 %v570, %v702
      %v704 = vpop.f32.mrb[0].mxu0
      %v705 = vpop.f32.mrb[0].mxu0
      %v706 = vadd.f32 %v570, %v705
      %v707 = vpop.f32.mrb[0].mxu0
      %708 = vmatprep.mubr.bf16.mxu0 0
      %709 = vmatmul.mubr.bf16.gmra.mrb[0].mxu0 %v548
      %v710 = vpop.f32.mrb[0].mxu0
      %v711 = vadd.f32 %v570, %v710
      %v712 = vpop.f32.mrb[0].mxu0
      %v713 = vpop.f32.mrb[0].mxu0
      %v714 = vadd.f32 %v570, %v713
      %v715 = vpop.f32.mrb[0].mxu0
      %716 = vdwg.mxu0
      %717 = vst [vmem:[%s226] sm:$0xff] %v655
      %718 = vst [vmem:[%s226 + $0x8] sm:$0xff] %v658
      %719 = vst [vmem:[%s226 + $0x10] sm:$0xff] %v663
      %720 = vst [vmem:[%s226 + $0x18] sm:$0xff] %v666
      %721 = vst [vmem:[%s226 + $0x20] sm:$0xff] %v671
      %722 = vst [vmem:[%s226 + $0x28] sm:$0xff] %v674
      %723 = vst [vmem:[%s226 + $0x30] sm:$0xff] %v679
      %724 = vst [vmem:[%s226 + $0x38] sm:$0xff] %v682
      %725 = vst [vmem:[%s226 + $0x40] sm:$0xff] %v687
      %726 = vst [vmem:[%s226 + $0x48] sm:$0xff] %v690
      %727 = vst [vmem:[%s226 + $0x50] sm:$0xff] %v695
      %728 = vst [vmem:[%s226 + $0x58] sm:$0xff] %v698
      %729 = vst [vmem:[%s226 + $0x60] sm:$0xff] %v703
      %730 = vst [vmem:[%s226 + $0x68] sm:$0xff] %v706
      %731 = vst [vmem:[%s226 + $0x70] sm:$0xff] %v711
      %732 = vst [vmem:[%s226 + $0x78] sm:$0xff] %v714
      %s733 = smul.u32 16, %s16
      %p734 = scmp.lt.s32.totalorder %s733, 31
      %s735 = scalar_select %p734, %s733, 31
      %s736 = smul.addr %s735, 8
      %s737 = scalar_lea.vmem %s5, %s736
      // Predicated region
      $region41: #{mlp_pallas.1} parent=39 // pred_check
        %p738 = pneg %p144
      $region42: #{mlp_pallas.1} parent=39 // pred_check_branch
        %740 = sbr.rel (%p738) target = $region44
      $region43: #{mlp_pallas.1} parent=39 // pred_region
        %s741 = smul.u32 16, %s16
      $region44: #{mlp_pallas.1} parent=39 // pred_fallthru
        _
    $region40: #{mlp_pallas.1} parent=5 // pred_fallthru
      _
    %p742 = scmp.le.s32.totalorder 2, %s11
    // Predicated region
    $region45: #{mlp_pallas.1} parent=5 // pred_check
      %p743 = pneg %p742
    $region46: #{mlp_pallas.1} parent=5 // pred_check_branch
      %745 = sbr.rel (%p743) target = $region48
    $region47: #{mlp_pallas.1} parent=5 // pred_region
      %s746 = ssub.s32 %s11, 2
      // Predicated region
      $region49: #{mlp_pallas.1} parent=47 // pred_check
        %p747 = pneg %p150
      $region50: #{mlp_pallas.1} parent=47 // pred_check_branch
        %749 = sbr.rel (%p747) target = $region52
      $region51: #{mlp_pallas.1} parent=47 // pred_region
        %s750 = smul.u32 16, %s17
        %p751 = scmp.lt.s32.totalorder %s750, 31
        %s752 = scalar_select %p751, %s750, 31
        %s753 = smul.addr %s752, 8
        %s754 = scalar_lea.vmem %s5, %s753
      $region52: #{mlp_pallas.1} parent=47 // pred_fallthru
        _
    $region48: #{mlp_pallas.1} parent=5 // pred_fallthru
      _
  $region6: #{mlp_pallas.1} parent=0 // loop_footer
    %s15 = sadd.s32 1, %s11
  $region7: #{mlp_pallas.1} parent=0 // loop_footer_branch
    %10 = sbr.rel target = $region3
  $region8: #{mlp_pallas.1} parent=0 // loop_exit
    _

</llo_original>
